<compile_context>
chip_gen: v6e
topology: v6e:2x2x1
jax: 0.10.0
libtpu: 0.0.40
codegen_flags: <defaults>
</compile_context>

<pallas_src>
import math

import jax
import jax.numpy as jnp
from jax import lax
from jax.experimental import pallas as pl
from jax.experimental.pallas import tpu as pltpu


def _round_up(x, m):
    return ((x + m - 1) // m) * m


def _cdiv(a, b):
    return -(-a // b)


def _mlp_kernel(x_ref, w1_ref, w2_ref, w3_ref, b_ref, o_ref):
    """Fused packed 3-layer MLP on one (TM, pack*D_in) row tile.

    x_ref:   (TM, pack*D_in)          compute dtype (f32 or bf16)
    w1_ref:  (pack*D_in, pack*H)      block-diagonal kron(I_pack, W1)
    w2_ref:  (pack*H,    pack*H)      kron(I_pack, W2)
    w3_ref:  (pack*H,    pack*D_out)  kron(I_pack, W3)
    b_ref:   (3, bias_width) f32      row r = tiled (zero-padded) bias of layer r
    o_ref:   (TM, pack*D_out)
    """
    h1p = w1_ref.shape[1]
    h2p = w2_ref.shape[1]
    dop = o_ref.shape[1]
    cdt = w1_ref.dtype

    h = jnp.dot(x_ref[...], w1_ref[...], preferred_element_type=jnp.float32)
    h = jnp.maximum(h + b_ref[0:1, 0:h1p], 0.0)                 # f32 bias+ReLU
    h = jnp.dot(h.astype(cdt), w2_ref[...], preferred_element_type=jnp.float32)
    h = jnp.maximum(h + b_ref[1:2, 0:h2p], 0.0)
    y = jnp.dot(h.astype(cdt), w3_ref[...], preferred_element_type=jnp.float32)
    o_ref[...] = (y + b_ref[2:3, 0:dop]).astype(o_ref.dtype)


def cwt_stat_predictor_forward(x, params, *, tile_rows=1024, compute_dtype=None,
                               target_lanes=128):
    """Forward pass matching CWTStatPredictor.forward.

    x:      (..., input_size)
    params: [(w1, b1), (w2, b2), (w3, b3)] with weights in (in, out) layout
            (torch's nn.Linear stores (out, in) and computes x @ W.T + b,
             which is identical after transposition).
    compute_dtype: optional MXU operand dtype (e.g. jnp.bfloat16) for the
            x-stream / weights; accumulation and bias/ReLU stay f32.
    """
    (w1, b1), (w2, b2), (w3, b3) = params
    d_in, h1 = w1.shape
    h2 = w2.shape[1]
    d_out = w3.shape[1]
    assert w2.shape[0] == h1 and w3.shape[0] == h2 and x.shape[-1] == d_in

    out_dtype = x.dtype
    cdt = jnp.dtype(compute_dtype) if compute_dtype is not None else jnp.dtype(x.dtype)

    lead = x.shape[:-1]
    m = int(math.prod(lead)) if lead else 1
    x2 = x.reshape(m, d_in)

    # ---- lane packing: view `pack` consecutive rows as one lane-dense row and
    # use block-diagonal weights so K and N fill the MXU tile / lanes. --------
    max_dim = max(d_in, h1, h2)
    pack = target_lanes // max_dim if max_dim <= target_lanes else 1
    pack = max(pack, 1)

    m_rows = _round_up(m, pack)
    if m_rows != m:
        x2 = jnp.pad(x2, ((0, m_rows - m), (0, 0)))
    mp = m_rows // pack
    xp = x2.reshape(mp, pack * d_in).astype(cdt)      # free row-major view

    def kron_pack(w):
        if pack == 1:
            return w
        return jnp.kron(jnp.eye(pack, dtype=w.dtype), w)

    w1p = kron_pack(w1).astype(cdt)
    w2p = kron_pack(w2).astype(cdt)
    w3p = kron_pack(w3).astype(cdt)
    d_in_p, h1_p = w1p.shape
    h2_p = w2p.shape[1]
    d_out_p = w3p.shape[1]

    bias_width = max(h1_p, h2_p, d_out_p)

    def tile_pad_bias(b):
        bt = jnp.tile(b, pack) if pack > 1 else b
        return jnp.pad(bt, (0, bias_width - bt.shape[0]))

    biases = jnp.stack([tile_pad_bias(b1), tile_pad_bias(b2),
                        tile_pad_bias(b3)]).astype(jnp.float32)   # (3, bias_width)

    # ---- row tiling (in packed rows); dtype-aware sublane minimum -----------
    sublane = {4: 8, 2: 16, 1: 32}[cdt.itemsize]
    # Keep >= 2 grid steps when M allows so the "parallel" axis shards across
    # both v7x TensorCores (no-op on v5e/v6e).
    tm = max(sublane, min(tile_rows, _round_up(_cdiv(mp, 2), sublane)))
    mp_pad = _round_up(mp, tm)
    if mp_pad != mp:
        xp = jnp.pad(xp, ((0, mp_pad - mp), (0, 0)))
    n_tiles = mp_pad // tm

    flops = 2 * mp_pad * (d_in_p * h1_p + h1_p * h2_p + h2_p * d_out_p)
    bytes_accessed = (xp.size * xp.dtype.itemsize
                      + mp_pad * d_out_p * jnp.dtype(out_dtype).itemsize
                      + (w1p.size + w2p.size + w3p.size) * cdt.itemsize
                      + biases.size * 4)
    cost = pl.CostEstimate(flops=int(flops), transcendentals=0,
                           bytes_accessed=int(bytes_accessed))

    out = pl.pallas_call(
        _mlp_kernel,
        out_shape=jax.ShapeDtypeStruct((mp_pad, d_out_p), out_dtype),
        grid_spec=pl.GridSpec(
            grid=(n_tiles,),
            in_specs=[
                pl.BlockSpec((tm, d_in_p), lambda i: (i, 0)),     # x row tile
                pl.BlockSpec((d_in_p, h1_p), lambda i: (0, 0)),   # resident weights
                pl.BlockSpec((h1_p, h2_p), lambda i: (0, 0)),
                pl.BlockSpec((h2_p, d_out_p), lambda i: (0, 0)),
                pl.BlockSpec((3, bias_width), lambda i: (0, 0)),  # resident biases
            ],
            out_specs=pl.BlockSpec((tm, d_out_p), lambda i: (i, 0)),
        ),
        compiler_params=pltpu.CompilerParams(
            dimension_semantics=("parallel",)),
        cost_estimate=cost,
    )(xp, w1p, w2p, w3p, biases)

    out = out[:mp].reshape(m_rows, d_out)[:m]
    return out.reshape(lead + (d_out,))


def make_cwt_stat_predictor_params(key, input_size, hidden_size, out_dims):
    """Deterministic synthetic parameters (torch Linear-style uniform init),
    stored directly in (in, out) layout."""
    dims = [(input_size, hidden_size),
            (hidden_size, hidden_size),
            (hidden_size, out_dims)]
    params = []
    for i, (din, dout) in enumerate(dims):
        kw, kb = jax.random.split(jax.random.fold_in(key, i))
        bound = 1.0 / math.sqrt(din)
        w = jax.random.uniform(kw, (din, dout), jnp.float32, -bound, bound)
        b = jax.random.uniform(kb, (dout,), jnp.float32, -bound, bound)
        params.append((w, b))
    return params


def cwt_stat_predictor_ref(x, params):
    """Pure-JAX reference (high-precision dots) for correctness checking."""
    (w1, b1), (w2, b2), (w3, b3) = params
    hp = lax.Precision.HIGHEST
    h = jnp.maximum(jnp.dot(x, w1, precision=hp) + b1, 0.0)
    h = jnp.maximum(jnp.dot(h, w2, precision=hp) + b2, 0.0)
    return jnp.dot(h, w3, precision=hp) + b3


if __name__ == "__main__":
    # Small shapes consistent with the module:
    #   encoder_hidden (input_size) = 32, cwt_hidden_size = 32,
    #   cwt_stats_out_dims = 2, batch = 2, seq = 8.
    B, T = 2, 8
    input_size, hidden_size, out_dims = 32, 32, 2

    key = jax.random.PRNGKey(0)
    kx, kp, kx2 = jax.random.split(key, 3)

    params = make_cwt_stat_predictor_params(kp, input_size, hidden_size,
                                            out_dims)

    # 1) f32 path, rows divisible by the 4-way packing factor.
    x = jax.random.normal(kx, (B, T, input_size), jnp.float32)
    out = jax.block_until_ready(cwt_stat_predictor_forward(x, params))
    ref = cwt_stat_predictor_ref(x, params)
    assert out.shape == (B, T, out_dims)
    err = float(jnp.max(jnp.abs(out - ref)))
    assert err < 2e-3, f"f32 mismatch vs reference: max abs err = {err}"

    # 2) f32 path, row count NOT a multiple of the packing factor (exercises
    #    the pad/slice path).
    x_odd = jax.random.normal(kx2, (3, 7, input_size), jnp.float32)
    out_odd = jax.block_until_ready(cwt_stat_predictor_forward(x_odd, params))
    ref_odd = cwt_stat_predictor_ref(x_odd, params)
    assert out_odd.shape == (3, 7, out_dims)
    err_odd = float(jnp.max(jnp.abs(out_odd - ref_odd)))
    assert err_odd < 2e-3, f"f32 odd-shape mismatch: max abs err = {err_odd}"

    # 3) bf16 compute path (halves HBM traffic for the x stream); looser tol.
    out_bf16 = jax.block_until_ready(
        cwt_stat_predictor_forward(x, params, compute_dtype=jnp.bfloat16))
    assert out_bf16.shape == (B, T, out_dims)
    err_bf16 = float(jnp.max(jnp.abs(out_bf16 - ref)))
    assert err_bf16 < 1e-1, f"bf16 mismatch vs reference: max abs err = {err_bf16}"

    print("KERNEL_OK")
</pallas_src>

<mosaic_0001>
module attributes {stable_mosaic.version = 11 : i64} {
  func.func @_mlp_kernel(%arg0: i32, %arg1: memref<8x128xf32, #tpu.memory_space<vmem>>, %arg2: memref<128x128xf32, #tpu.memory_space<vmem>>, %arg3: memref<128x128xf32, #tpu.memory_space<vmem>>, %arg4: memref<128x8xf32, #tpu.memory_space<vmem>>, %arg5: memref<3x128xf32, #tpu.memory_space<vmem>>, %arg6: memref<8x8xf32, #tpu.memory_space<vmem>>) attributes {dimension_semantics = [#tpu.dimension_semantics<parallel>], iteration_bounds = array<i64: 1>, scalar_prefetch = 0 : i64, scratch_operands = 0 : i64, tpu.core_type = #tpu.core_type<tc>, window_params = [{transform_indices = @transform_0, window_bounds = array<i64: 8, 128>}, {pipeline_mode = #tpu.pipeline_mode<synchronous>, transform_indices = @transform_1, window_bounds = array<i64: 128, 128>}, {pipeline_mode = #tpu.pipeline_mode<synchronous>, transform_indices = @transform_2, window_bounds = array<i64: 128, 128>}, {pipeline_mode = #tpu.pipeline_mode<synchronous>, transform_indices = @transform_3, window_bounds = array<i64: 128, 8>}, {pipeline_mode = #tpu.pipeline_mode<synchronous>, transform_indices = @transform_4, window_bounds = array<i64: 3, 128>}, {transform_indices = @transform_5, window_bounds = array<i64: 8, 8>}]} {
    %c0 = arith.constant 0 : index
    %c0_0 = arith.constant 0 : index
    %0 = vector.load %arg1[%c0, %c0_0] : memref<8x128xf32, #tpu.memory_space<vmem>>, vector<8x128xf32>
    %c0_1 = arith.constant 0 : index
    %c0_2 = arith.constant 0 : index
    %1 = vector.load %arg2[%c0_1, %c0_2] : memref<128x128xf32, #tpu.memory_space<vmem>>, vector<128x128xf32>
    %cst = arith.constant dense<0.000000e+00> : vector<8x128xf32>
    %2 = tpu.matmul %0, %1, %cst {dimension_numbers = #tpu.dot_dimension_numbers<[1], [0], [0], [1], [0, 0, 1, 1], [], []>} : vector<8x128xf32>, vector<128x128xf32>, vector<8x128xf32> -> vector<8x128xf32>
    %c0_3 = arith.constant 0 : index
    %c0_4 = arith.constant 0 : index
    %3 = vector.load %arg5[%c0_3, %c0_4] : memref<3x128xf32, #tpu.memory_space<vmem>>, vector<1x128xf32>
    %4 = vector.broadcast %3 : vector<1x128xf32> to vector<8x128xf32>
    %5 = arith.addf %2, %4 : vector<8x128xf32>
    %cst_5 = arith.constant 0.000000e+00 : f32
    %6 = vector.broadcast %cst_5 : f32 to vector<8x128xf32>
    %7 = arith.maximumf %5, %6 : vector<8x128xf32>
    %c0_6 = arith.constant 0 : index
    %c0_7 = arith.constant 0 : index
    %8 = vector.load %arg3[%c0_6, %c0_7] : memref<128x128xf32, #tpu.memory_space<vmem>>, vector<128x128xf32>
    %cst_8 = arith.constant dense<0.000000e+00> : vector<8x128xf32>
    %9 = tpu.matmul %7, %8, %cst_8 {dimension_numbers = #tpu.dot_dimension_numbers<[1], [0], [0], [1], [0, 0, 1, 1], [], []>} : vector<8x128xf32>, vector<128x128xf32>, vector<8x128xf32> -> vector<8x128xf32>
    %c1 = arith.constant 1 : index
    %c0_9 = arith.constant 0 : index
    %10 = vector.load %arg5[%c1, %c0_9] : memref<3x128xf32, #tpu.memory_space<vmem>>, vector<1x128xf32>
    %11 = vector.broadcast %10 : vector<1x128xf32> to vector<8x128xf32>
    %12 = arith.addf %9, %11 : vector<8x128xf32>
    %cst_10 = arith.constant 0.000000e+00 : f32
    %13 = vector.broadcast %cst_10 : f32 to vector<8x128xf32>
    %14 = arith.maximumf %12, %13 : vector<8x128xf32>
    %c0_11 = arith.constant 0 : index
    %c0_12 = arith.constant 0 : index
    %15 = vector.load %arg4[%c0_11, %c0_12] : memref<128x8xf32, #tpu.memory_space<vmem>>, vector<128x8xf32>
    %cst_13 = arith.constant dense<0.000000e+00> : vector<8x8xf32>
    %16 = tpu.matmul %14, %15, %cst_13 {dimension_numbers = #tpu.dot_dimension_numbers<[1], [0], [0], [1], [0, 0, 1, 1], [], []>} : vector<8x128xf32>, vector<128x8xf32>, vector<8x8xf32> -> vector<8x8xf32>
    %c2 = arith.constant 2 : index
    %c0_14 = arith.constant 0 : index
    %17 = vector.load %arg5[%c2, %c0_14] : memref<3x128xf32, #tpu.memory_space<vmem>>, vector<1x8xf32>
    %18 = vector.broadcast %17 : vector<1x8xf32> to vector<8x8xf32>
    %19 = arith.addf %16, %18 : vector<8x8xf32>
    %c0_15 = arith.constant 0 : index
    %c0_16 = arith.constant 0 : index
    %20 = vector.load %arg6[%c0_15, %c0_16] : memref<8x8xf32, #tpu.memory_space<vmem>>, vector<8x8xf32>
    tpu.vector_store %arg6[%c0_15, %c0_16], %19 {strides = array<i32>} : memref<8x8xf32, #tpu.memory_space<vmem>>, vector<8x8xf32>,
    return
  }
  func.func @transform_0(%arg0: i32) -> (i32, i32) {
    %c0_i32 = arith.constant 0 : i32
    %c0_i32_0 = arith.constant 0 : i32
    return %arg0, %c0_i32 : i32, i32
  }
  func.func @transform_1(%arg0: i32) -> (i32, i32) {
    %c0_i32 = arith.constant 0 : i32
    %c0_i32_0 = arith.constant 0 : i32
    %c0_i32_1 = arith.constant 0 : i32
    return %c0_i32, %c0_i32_0 : i32, i32
  }
  func.func @transform_2(%arg0: i32) -> (i32, i32) {
    %c0_i32 = arith.constant 0 : i32
    %c0_i32_0 = arith.constant 0 : i32
    %c0_i32_1 = arith.constant 0 : i32
    return %c0_i32, %c0_i32_0 : i32, i32
  }
  func.func @transform_3(%arg0: i32) -> (i32, i32) {
    %c0_i32 = arith.constant 0 : i32
    %c0_i32_0 = arith.constant 0 : i32
    %c0_i32_1 = arith.constant 0 : i32
    return %c0_i32, %c0_i32_0 : i32, i32
  }
  func.func @transform_4(%arg0: i32) -> (i32, i32) {
    %c0_i32 = arith.constant 0 : i32
    %c0_i32_0 = arith.constant 0 : i32
    %c0_i32_1 = arith.constant 0 : i32
    return %c0_i32, %c0_i32_0 : i32, i32
  }
  func.func @transform_5(%arg0: i32) -> (i32, i32) {
    %c0_i32 = arith.constant 0 : i32
    %c0_i32_0 = arith.constant 0 : i32
    return %arg0, %c0_i32 : i32, i32
  }
}

</mosaic_0001>

<llo_original>
// kernel: tpu_custom_call.1
$region0: #{tpu_custom_call.1}
  #allocation0 [shape = 'u32[]', space=smem, size = 0x4, offset = 0x4, fixed_abs, tag = 'smem constant byte address 0x4 - core index']
  #allocation1 [shape = 'u32[144,128]{1,0:T(1,128)}', space=vmem, size = 0x12000, scoped, tag = 'internal scratch']
  %s0 = inlined_call_operand.vmem [shape: f32[8,128], index: 0, kind: input, shape index: {}]
  %s1 = inlined_call_operand.vmem [shape: f32[128,128], index: 1, kind: input, shape index: {}]
  %s2 = inlined_call_operand.hbm [shape: f32[128,128], index: 2, kind: input, shape index: {}]
  %s3 = inlined_call_operand.vmem [shape: f32[128,8], index: 3, kind: input, shape index: {}]
  %s4 = inlined_call_operand.vmem [shape: f32[3,128], index: 4, kind: input, shape index: {}]
  %s5 = inlined_call_operand.hbm [shape: f32[8,8], index: 5, kind: output, shape index: {}]
  %s6 = sld [smem:[#allocation0]]
  $region34: #{tpu_custom_call.1} parent=0
    _
  %s8 = ssub.s32 1, %s6
  %s9 = scalar_select 0, %s8, %s6
  $region1: #{tpu_custom_call.1} parent=0
    #allocation2 [shape = 'u8[65536]{0}', space=vmem, size = 0x10000, scoped, tag = 'input window, operand 2, single buffered']
    #allocation3 [shape = 's32[1]{0}', space=sflag, size = 0x4, scoped, tag = 'scoped memory for tpu_custom_call.1']
    #allocation4 [shape = 's32[1]{0}', space=sflag, size = 0x4, scoped, tag = 'scoped memory for tpu_custom_call.1']
    #allocation5 [shape = 'u8[4096]{0}', space=vmem, size = 0x1000, scoped, tag = 'output window, operand 0, single buffered']
    %10 = vsyncpa [#allocation3], 0
    %11 = vsyncpa [#allocation4], 0
    // Predicated region
    $region2: #{tpu_custom_call.1} parent=1 // pred_check
      _
    $region3: #{tpu_custom_call.1} parent=1 // pred_check_branch
      %13 = sbr.rel (0) target = $region5
    $region4: #{tpu_custom_call.1} parent=1 // pred_region
      _
    $region5: #{tpu_custom_call.1} parent=1 // pred_fallthru
      _
    // Predicated region
    $region6: #{tpu_custom_call.1} parent=1 // pred_check
      _
    $region7: #{tpu_custom_call.1} parent=1 // pred_check_branch
      %15 = sbr.rel (0) target = $region9
    $region8: #{tpu_custom_call.1} parent=1 // pred_region
      _
    $region9: #{tpu_custom_call.1} parent=1 // pred_fallthru
      _
    // Predicated region
    $region10: #{tpu_custom_call.1} parent=1 // pred_check
      _
    $region11: #{tpu_custom_call.1} parent=1 // pred_check_branch
      %17 = sbr.rel (0) target = $region13
    $region12: #{tpu_custom_call.1} parent=1 // pred_region
      %s19 = ssub.s32 2048, 2048
      %20 = vsyncadd [#allocation3], %s19
      %s21 = sshll.u32 [#allocation2], 4
      %s22 = int_to_ptr.vmem [resolvable:$true] %s21
      %27 = dma.hbm_to_vmem [thread:$0]  %s2, 2048, %s22, [#allocation3], 128, 128, 8
    $region13: #{tpu_custom_call.1} parent=1 // pred_fallthru
      _
    // Predicated region
    $region14: #{tpu_custom_call.1} parent=1 // pred_check
      _
    $region15: #{tpu_custom_call.1} parent=1 // pred_check_branch
      %29 = sbr.rel (0) target = $region17
    $region16: #{tpu_custom_call.1} parent=1 // pred_region
      _
    $region17: #{tpu_custom_call.1} parent=1 // pred_fallthru
      _
    // Predicated region
    $region18: #{tpu_custom_call.1} parent=1 // pred_check
      _
    $region19: #{tpu_custom_call.1} parent=1 // pred_check_branch
      %31 = sbr.rel (0) target = $region21
    $region20: #{tpu_custom_call.1} parent=1 // pred_region
      _
    $region21: #{tpu_custom_call.1} parent=1 // pred_fallthru
      _
    // Predicated region
    $region22: #{tpu_custom_call.1} parent=1 // pred_check
      _
    $region23: #{tpu_custom_call.1} parent=1 // pred_check_branch
      %33 = sbr.rel (0) target = $region25
    $region24: #{tpu_custom_call.1} parent=1 // pred_region
      %34 = dma.done [#allocation3], 2048
    $region25: #{tpu_custom_call.1} parent=1 // pred_fallthru
      _
    %v35 = vld [vmem:[%s0] sm:$0xff]
    %v36 = vld [vmem:[%s1] sm:$0xff]
    %v37 = vld [vmem:[%s1 + $0x8] sm:$0xff]
    %v38 = vld [vmem:[%s1 + $0x10] sm:$0xff]
    %v39 = vld [vmem:[%s1 + $0x18] sm:$0xff]
    %v40 = vld [vmem:[%s1 + $0x20] sm:$0xff]
    %v41 = vld [vmem:[%s1 + $0x28] sm:$0xff]
    %v42 = vld [vmem:[%s1 + $0x30] sm:$0xff]
    %v43 = vld [vmem:[%s1 + $0x38] sm:$0xff]
    %v44 = vld [vmem:[%s1 + $0x40] sm:$0xff]
    %v45 = vld [vmem:[%s1 + $0x48] sm:$0xff]
    %v46 = vld [vmem:[%s1 + $0x50] sm:$0xff]
    %v47 = vld [vmem:[%s1 + $0x58] sm:$0xff]
    %v48 = vld [vmem:[%s1 + $0x60] sm:$0xff]
    %v49 = vld [vmem:[%s1 + $0x68] sm:$0xff]
    %v50 = vld [vmem:[%s1 + $0x70] sm:$0xff]
    %v51 = vld [vmem:[%s1 + $0x78] sm:$0xff]
    %v52 = vld [vmem:[%s4] sm:$0x1]
    %v53 = vlaneseq
    %v54 = vshrl.u32 %v53, 7
    %v55 = vsub.s32 0, %v54
    %v56 = vrot.slane %v52, %v55
    %57 = vmatprep.subr.mxu0 0.0
    %58 = vmatpush1.msra.mxu0 %v51
    %59 = vmatprep.subr.mxu0 0.0
    %60 = vmatpush1.msra.mxu0 %v50
    %61 = vmatprep.subr.mxu0 0.0
    %62 = vmatpush1.msra.mxu0 %v49
    %63 = vmatprep.subr.mxu0 0.0
    %64 = vmatpush1.msra.mxu0 %v48
    %65 = vmatprep.subr.mxu0 0.0
    %66 = vmatpush1.msra.mxu0 %v47
    %67 = vmatprep.subr.mxu0 0.0
    %68 = vmatpush1.msra.mxu0 %v46
    %69 = vmatprep.subr.mxu0 0.0
    %70 = vmatpush1.msra.mxu0 %v45
    %71 = vmatprep.subr.mxu0 0.0
    %72 = vmatpush1.msra.mxu0 %v44
    %73 = vmatprep.subr.mxu0 0.0
    %74 = vmatpush1.msra.mxu0 %v43
    %75 = vmatprep.subr.mxu0 0.0
    %76 = vmatpush1.msra.mxu0 %v42
    %77 = vmatprep.subr.mxu0 0.0
    %78 = vmatpush1.msra.mxu0 %v41
    %79 = vmatprep.subr.mxu0 0.0
    %80 = vmatpush1.msra.mxu0 %v40
    %81 = vmatprep.subr.mxu0 0.0
    %82 = vmatpush1.msra.mxu0 %v39
    %83 = vmatprep.subr.mxu0 0.0
    %84 = vmatpush1.msra.mxu0 %v38
    %85 = vmatprep.subr.mxu0 0.0
    %86 = vmatpush1.msra.mxu0 %v37
    %87 = vmatprep.subr.mxu0 0.0
    %88 = vmatpush1.msra.mxu0 %v36
    %89 = vmatprep.subr.mxu0 0.0
    %90 = vmatpush2.msra.mxu0 0.0
    %91 = vmatprep.subr.mxu0 0.0
    %92 = vmatpush2.msra.mxu0 0.0
    %93 = vmatprep.subr.mxu0 0.0
    %94 = vmatpush2.msra.mxu0 0.0
    %95 = vmatprep.subr.mxu0 0.0
    %96 = vmatpush2.msra.mxu0 0.0
    %97 = vmatprep.subr.mxu0 0.0
    %98 = vmatpush2.msra.mxu0 0.0
    %99 = vmatprep.subr.mxu0 0.0
    %100 = vmatpush2.msra.mxu0 0.0
    %101 = vmatprep.subr.mxu0 0.0
    %102 = vmatpush2.msra.mxu0 0.0
    %103 = vmatprep.subr.mxu0 0.0
    %104 = vmatpush2.msra.mxu0 0.0
    %105 = vmatprep.subr.mxu0 0.0
    %106 = vmatpush2.msra.mxu0 0.0
    %107 = vmatprep.subr.mxu0 0.0
    %108 = vmatpush2.msra.mxu0 0.0
    %109 = vmatprep.subr.mxu0 0.0
    %110 = vmatpush2.msra.mxu0 0.0
    %111 = vmatprep.subr.mxu0 0.0
    %112 = vmatpush2.msra.mxu0 0.0
    %113 = vmatprep.subr.mxu0 0.0
    %114 = vmatpush2.msra.mxu0 0.0
    %115 = vmatprep.subr.mxu0 0.0
    %116 = vmatpush2.msra.mxu0 0.0
    %117 = vmatprep.subr.mxu0 0.0
    %118 = vmatpush2.msra.mxu0 0.0
    %119 = vmatprep.subr.mxu0 0.0
    %120 = vmatpush2.msra.mxu0 0.0
    %121 = vmatprep.mubr.f32.mxu0 0.0
    %122 = vmatmul.mubr.f32.gmra.mxu0 %v35
    %v123 = vpop.f32.mrf.mxu0
    %v124 = vadd.f32 %v56, %v123
    %v125 = vpop.f32.mrf.mxu0
    %126 = vdwg.mxu0
    %v127 = vmax.f32 %v124, 0.0
    %v128 = vld [vmem:[#allocation2] sm:$0xff]
    %v129 = vld [vmem:[#allocation2 + $0x8] sm:$0xff]
    %v130 = vld [vmem:[#allocation2 + $0x10] sm:$0xff]
    %v131 = vld [vmem:[#allocation2 + $0x18] sm:$0xff]
    %v132 = vld [vmem:[#allocation2 + $0x20] sm:$0xff]
    %v133 = vld [vmem:[#allocation2 + $0x28] sm:$0xff]
    %v134 = vld [vmem:[#allocation2 + $0x30] sm:$0xff]
    %v135 = vld [vmem:[#allocation2 + $0x38] sm:$0xff]
    %v136 = vld [vmem:[#allocation2 + $0x40] sm:$0xff]
    %v137 = vld [vmem:[#allocation2 + $0x48] sm:$0xff]
    %v138 = vld [vmem:[#allocation2 + $0x50] sm:$0xff]
    %v139 = vld [vmem:[#allocation2 + $0x58] sm:$0xff]
    %v140 = vld [vmem:[#allocation2 + $0x60] sm:$0xff]
    %v141 = vld [vmem:[#allocation2 + $0x68] sm:$0xff]
    %v142 = vld [vmem:[#allocation2 + $0x70] sm:$0xff]
    %v143 = vld [vmem:[#allocation2 + $0x78] sm:$0xff]
    %v144 = vld [vmem:[%s4 + $0x1] sm:$0x1]
    %v145 = vlaneseq
    %v146 = vshrl.u32 %v145, 7
    %v147 = vsub.s32 0, %v146
    %v148 = vrot.slane %v144, %v147
    %149 = vmatprep.subr.mxu0 0.0
    %150 = vmatpush1.msra.mxu0 %v143
    %151 = vmatprep.subr.mxu0 0.0
    %152 = vmatpush1.msra.mxu0 %v142
    %153 = vmatprep.subr.mxu0 0.0
    %154 = vmatpush1.msra.mxu0 %v141
    %155 = vmatprep.subr.mxu0 0.0
    %156 = vmatpush1.msra.mxu0 %v140
    %157 = vmatprep.subr.mxu0 0.0
    %158 = vmatpush1.msra.mxu0 %v139
    %159 = vmatprep.subr.mxu0 0.0
    %160 = vmatpush1.msra.mxu0 %v138
    %161 = vmatprep.subr.mxu0 0.0
    %162 = vmatpush1.msra.mxu0 %v137
    %163 = vmatprep.subr.mxu0 0.0
    %164 = vmatpush1.msra.mxu0 %v136
    %165 = vmatprep.subr.mxu0 0.0
    %166 = vmatpush1.msra.mxu0 %v135
    %167 = vmatprep.subr.mxu0 0.0
    %168 = vmatpush1.msra.mxu0 %v134
    %169 = vmatprep.subr.mxu0 0.0
    %170 = vmatpush1.msra.mxu0 %v133
    %171 = vmatprep.subr.mxu0 0.0
    %172 = vmatpush1.msra.mxu0 %v132
    %173 = vmatprep.subr.mxu0 0.0
    %174 = vmatpush1.msra.mxu0 %v131
    %175 = vmatprep.subr.mxu0 0.0
    %176 = vmatpush1.msra.mxu0 %v130
    %177 = vmatprep.subr.mxu0 0.0
    %178 = vmatpush1.msra.mxu0 %v129
    %179 = vmatprep.subr.mxu0 0.0
    %180 = vmatpush1.msra.mxu0 %v128
    %181 = vmatprep.subr.mxu0 0.0
    %182 = vmatpush2.msra.mxu0 0.0
    %183 = vmatprep.subr.mxu0 0.0
    %184 = vmatpush2.msra.mxu0 0.0
    %185 = vmatprep.subr.mxu0 0.0
    %186 = vmatpush2.msra.mxu0 0.0
    %187 = vmatprep.subr.mxu0 0.0
    %188 = vmatpush2.msra.mxu0 0.0
    %189 = vmatprep.subr.mxu0 0.0
    %190 = vmatpush2.msra.mxu0 0.0
    %191 = vmatprep.subr.mxu0 0.0
    %192 = vmatpush2.msra.mxu0 0.0
    %193 = vmatprep.subr.mxu0 0.0
    %194 = vmatpush2.msra.mxu0 0.0
    %195 = vmatprep.subr.mxu0 0.0
    %196 = vmatpush2.msra.mxu0 0.0
    %197 = vmatprep.subr.mxu0 0.0
    %198 = vmatpush2.msra.mxu0 0.0
    %199 = vmatprep.subr.mxu0 0.0
    %200 = vmatpush2.msra.mxu0 0.0
    %201 = vmatprep.subr.mxu0 0.0
    %202 = vmatpush2.msra.mxu0 0.0
    %203 = vmatprep.subr.mxu0 0.0
    %204 = vmatpush2.msra.mxu0 0.0
    %205 = vmatprep.subr.mxu0 0.0
    %206 = vmatpush2.msra.mxu0 0.0
    %207 = vmatprep.subr.mxu0 0.0
    %208 = vmatpush2.msra.mxu0 0.0
    %209 = vmatprep.subr.mxu0 0.0
    %210 = vmatpush2.msra.mxu0 0.0
    %211 = vmatprep.subr.mxu0 0.0
    %212 = vmatpush2.msra.mxu0 0.0
    %213 = vmatprep.mubr.f32.mxu0 0.0
    %214 = vmatmul.mubr.f32.gmra.mxu0 %v127
    %v215 = vpop.f32.mrf.mxu0
    %v216 = vadd.f32 %v148, %v215
    %v217 = vpop.f32.mrf.mxu0
    %218 = vdwg.mxu0
    %v219 = vmax.f32 %v216, 0.0
    %v220 = vld [vmem:[%s3] sm:$0xff]
    %v221 = vld [vmem:[%s3 + $0x8] sm:$0xff]
    %v222 = vld [vmem:[%s3 + $0x10] sm:$0xff]
    %v223 = vld [vmem:[%s3 + $0x18] sm:$0xff]
    %v224 = vld [vmem:[%s3 + $0x20] sm:$0xff]
    %v225 = vld [vmem:[%s3 + $0x28] sm:$0xff]
    %v226 = vld [vmem:[%s3 + $0x30] sm:$0xff]
    %v227 = vld [vmem:[%s3 + $0x38] sm:$0xff]
    %v228 = vld [vmem:[%s3 + $0x40] sm:$0xff]
    %v229 = vld [vmem:[%s3 + $0x48] sm:$0xff]
    %v230 = vld [vmem:[%s3 + $0x50] sm:$0xff]
    %v231 = vld [vmem:[%s3 + $0x58] sm:$0xff]
    %v232 = vld [vmem:[%s3 + $0x60] sm:$0xff]
    %v233 = vld [vmem:[%s3 + $0x68] sm:$0xff]
    %v234 = vld [vmem:[%s3 + $0x70] sm:$0xff]
    %v235 = vld [vmem:[%s3 + $0x78] sm:$0xff]
    %v236 = vld [vmem:[%s4 + $0x2] sm:$0x1]
    %v237 = vlaneseq
    %v238 = vshrl.u32 %v237, 7
    %v239 = vsub.s32 0, %v238
    %v240 = vrot.slane %v236, %v239
    %241 = vmatprep.subr.mxu0 0.0
    %242 = vmatpush1.msra.mxu0 %v235
    %243 = vmatprep.subr.mxu0 0.0
    %244 = vmatpush1.msra.mxu0 %v234
    %245 = vmatprep.subr.mxu0 0.0
    %246 = vmatpush1.msra.mxu0 %v233
    %247 = vmatprep.subr.mxu0 0.0
    %248 = vmatpush1.msra.mxu0 %v232
    %249 = vmatprep.subr.mxu0 0.0
    %250 = vmatpush1.msra.mxu0 %v231
    %251 = vmatprep.subr.mxu0 0.0
    %252 = vmatpush1.msra.mxu0 %v230
    %253 = vmatprep.subr.mxu0 0.0
    %254 = vmatpush1.msra.mxu0 %v229
    %255 = vmatprep.subr.mxu0 0.0
    %256 = vmatpush1.msra.mxu0 %v228
    %257 = vmatprep.subr.mxu0 0.0
    %258 = vmatpush1.msra.mxu0 %v227
    %259 = vmatprep.subr.mxu0 0.0
    %260 = vmatpush1.msra.mxu0 %v226
    %261 = vmatprep.subr.mxu0 0.0
    %262 = vmatpush1.msra.mxu0 %v225
    %263 = vmatprep.subr.mxu0 0.0
    %264 = vmatpush1.msra.mxu0 %v224
    %265 = vmatprep.subr.mxu0 0.0
    %266 = vmatpush1.msra.mxu0 %v223
    %267 = vmatprep.subr.mxu0 0.0
    %268 = vmatpush1.msra.mxu0 %v222
    %269 = vmatprep.subr.mxu0 0.0
    %270 = vmatpush1.msra.mxu0 %v221
    %271 = vmatprep.subr.mxu0 0.0
    %272 = vmatpush1.msra.mxu0 %v220
    %273 = vmatprep.subr.mxu0 0.0
    %274 = vmatpush2.msra.mxu0 0.0
    %275 = vmatprep.subr.mxu0 0.0
    %276 = vmatpush2.msra.mxu0 0.0
    %277 = vmatprep.subr.mxu0 0.0
    %278 = vmatpush2.msra.mxu0 0.0
    %279 = vmatprep.subr.mxu0 0.0
    %280 = vmatpush2.msra.mxu0 0.0
    %281 = vmatprep.subr.mxu0 0.0
    %282 = vmatpush2.msra.mxu0 0.0
    %283 = vmatprep.subr.mxu0 0.0
    %284 = vmatpush2.msra.mxu0 0.0
    %285 = vmatprep.subr.mxu0 0.0
    %286 = vmatpush2.msra.mxu0 0.0
    %287 = vmatprep.subr.mxu0 0.0
    %288 = vmatpush2.msra.mxu0 0.0
    %289 = vmatprep.subr.mxu0 0.0
    %290 = vmatpush2.msra.mxu0 0.0
    %291 = vmatprep.subr.mxu0 0.0
    %292 = vmatpush2.msra.mxu0 0.0
    %293 = vmatprep.subr.mxu0 0.0
    %294 = vmatpush2.msra.mxu0 0.0
    %295 = vmatprep.subr.mxu0 0.0
    %296 = vmatpush2.msra.mxu0 0.0
    %297 = vmatprep.subr.mxu0 0.0
    %298 = vmatpush2.msra.mxu0 0.0
    %299 = vmatprep.subr.mxu0 0.0
    %300 = vmatpush2.msra.mxu0 0.0
    %301 = vmatprep.subr.mxu0 0.0
    %302 = vmatpush2.msra.mxu0 0.0
    %303 = vmatprep.subr.mxu0 0.0
    %304 = vmatpush2.msra.mxu0 0.0
    %305 = vmatprep.mubr.f32.mxu0 0.0
    %306 = vmatmul.mubr.f32.gmra.mxu0 %v219
    %v307 = vpop.f32.mrf.mxu0
    %v308 = vadd.f32 %v240, %v307
    %v309 = vpop.f32.mrf.mxu0
    %310 = vdwg.mxu0
    %vm311 = vcmask 64512
    %312 = vst.msk [vmem:[#allocation5] sm:$0xff] %vm311, %v308
    // Predicated region
    $region26: #{tpu_custom_call.1} parent=1 // pred_check
      _
    $region27: #{tpu_custom_call.1} parent=1 // pred_check_branch
      %314 = sbr.rel (0) target = $region29
    $region28: #{tpu_custom_call.1} parent=1 // pred_region
      %s316 = ssub.s32 128, 128
      %317 = vsyncadd [#allocation4], %s316
      %s319 = sshll.u32 [#allocation5], 4
      %s320 = int_to_ptr.vmem [resolvable:$true] %s319
      %322 = dma.vmem_to_hbm [thread:$0]  %s320, 128, %s5, [#allocation4]
    $region29: #{tpu_custom_call.1} parent=1 // pred_fallthru
      _
    // Predicated region
    $region30: #{tpu_custom_call.1} parent=1 // pred_check
      _
    $region31: #{tpu_custom_call.1} parent=1 // pred_check_branch
      %324 = sbr.rel (0) target = $region33
    $region32: #{tpu_custom_call.1} parent=1 // pred_region
      %325 = dma.done [#allocation4], 128
    $region33: #{tpu_custom_call.1} parent=1 // pred_fallthru
      _
    %326 = vsyncpa [#allocation3], 1
    %327 = vsyncpa [#allocation4], 1

</llo_original>
